<compile_context>
chip_gen: v5e
topology: v5e:2x2
jax: 0.10.0
libtpu: 0.0.40
codegen_flags: <defaults>
</compile_context>

<pallas_src>
import math

import jax
import jax.numpy as jnp
from jax.experimental import pallas as pl
from jax.experimental.pallas import tpu as pltpu


def _round_up(x, m):
    return ((x + m - 1) // m) * m


def _mlp_kernel(x_ref, w1_ref, b1_ref, w2_ref, b2_ref, w3_ref, b3_ref, o_ref):
    """Fused 3-layer MLP: relu(x@W1+b1) -> relu(.@W2+b2) -> .@W3+b3.

    x arrives f32 (tiny [TB,10] tile) and is cast to bf16 in-kernel; weights
    are bf16 (MXU fast path); accumulation + bias-add + ReLU stay in f32.
    """
    x = x_ref[...].astype(jnp.bfloat16)  # [TB, obs_dim] bf16

    h1 = jnp.dot(x, w1_ref[...], preferred_element_type=jnp.float32) + b1_ref[...]
    h1 = jnp.maximum(h1, 0.0).astype(jnp.bfloat16)

    h2 = jnp.dot(h1, w2_ref[...], preferred_element_type=jnp.float32) + b2_ref[...]
    h2 = jnp.maximum(h2, 0.0).astype(jnp.bfloat16)

    out = jnp.dot(h2, w3_ref[...], preferred_element_type=jnp.float32) + b3_ref[...]
    o_ref[...] = out.astype(o_ref.dtype)


def prepare_params(params):
    """One-time parameter prep (hoisted out of the per-call hot path).

    Casts weights to bf16, biases to f32, and pads the last layer's output
    width (num_out=5) up to 128 lanes so the kernel's writes are lane-dense.
    Call once; reuse the returned dict for every forward call.
    """
    hidden = params["w1"].shape[1]
    num_out = params["w3"].shape[1]
    n_pad = _round_up(num_out, 128)
    bf16 = jnp.bfloat16

    w3p = jnp.zeros((hidden, n_pad), bf16).at[:, :num_out].set(
        params["w3"].astype(bf16))
    b3p = jnp.zeros((1, n_pad), jnp.float32).at[:, :num_out].set(
        params["b3"].astype(jnp.float32))

    prepared = {
        "w1": params["w1"].astype(bf16),          # [obs_dim, hidden]
        "b1": params["b1"].astype(jnp.float32),   # [1, hidden]
        "w2": params["w2"].astype(bf16),          # [hidden, hidden]
        "b2": params["b2"].astype(jnp.float32),   # [1, hidden]
        "w3": w3p,                                 # [hidden, n_pad]
        "b3": b3p,                                 # [1, n_pad]
    }
    prepared = jax.block_until_ready(jax.tree_util.tree_map(jnp.asarray, prepared))
    # Static metadata (plain Python ints; wrapper is not jitted through these).
    prepared["_num_out"] = num_out
    prepared["_n_pad"] = n_pad
    return prepared


def _pick_batch_tiling(B):
    """Choose (TB, B_pad, n_blocks).

    - Small B (<=128): single block, rounded to 16 rows (bf16 sublane pack).
    - Moderate B (<=1024): exactly 2 blocks so both v7x TensorCores get work.
    - Large B: 512-row blocks (per-step grid overhead amortized; <2 MiB VMEM).
    """
    if B <= 128:
        TB = _round_up(B, 16)
        return TB, TB, 1
    if B <= 1024:
        TB = _round_up((B + 1) // 2, 16)
        return TB, 2 * TB, 2
    TB = 512
    B_pad = _round_up(B, TB)
    return TB, B_pad, B_pad // TB


def custom_torch_model_forward(obs, prepared):
    """Pallas equivalent of CustomTorchModel.forward.

    obs      : [B, obs_dim] float32
    prepared : output of prepare_params()
    Returns logits [B, num_out] float32.
    """
    B, obs_dim = obs.shape
    hidden = prepared["w1"].shape[1]
    num_out = prepared["_num_out"]
    N = prepared["_n_pad"]

    TB, B_pad, n_blocks = _pick_batch_tiling(B)

    # Only per-call data prep: pad batch rows if needed (kept f32, unpadded K).
    if B_pad != B:
        x = jnp.zeros((B_pad, obs_dim), jnp.float32).at[:B, :].set(obs)
    else:
        x = obs

    w1, b1 = prepared["w1"], prepared["b1"]
    w2, b2 = prepared["w2"], prepared["b2"]
    w3, b3 = prepared["w3"], prepared["b3"]

    flops = 2 * B_pad * (obs_dim * hidden + hidden * hidden + hidden * N)
    bytes_accessed = (
        x.size * 4                                   # f32 activations in
        + (w1.size + w2.size + w3.size) * 2          # bf16 weights
        + (b1.size + b2.size + b3.size) * 4          # f32 biases
        + B_pad * N * 4                              # f32 output
    )

    out = pl.pallas_call(
        _mlp_kernel,
        out_shape=jax.ShapeDtypeStruct((B_pad, N), jnp.float32),
        grid=(n_blocks,),
        in_specs=[
            # x: batch-tiled; last dim equals the full array dim (obs_dim),
            # so the (8,128) constraint is satisfied without padding K.
            pl.BlockSpec((TB, obs_dim), lambda i: (i, 0)),
            pl.BlockSpec((obs_dim, hidden), lambda i: (0, 0)),   # w1: resident
            pl.BlockSpec((1, hidden), lambda i: (0, 0)),         # b1
            pl.BlockSpec((hidden, hidden), lambda i: (0, 0)),    # w2
            pl.BlockSpec((1, hidden), lambda i: (0, 0)),         # b2
            pl.BlockSpec((hidden, N), lambda i: (0, 0)),         # w3 (padded N)
            pl.BlockSpec((1, N), lambda i: (0, 0)),              # b3 (padded N)
        ],
        out_specs=pl.BlockSpec((TB, N), lambda i: (i, 0)),
        compiler_params=pltpu.CompilerParams(
            dimension_semantics=("parallel",)),
        cost_estimate=pl.CostEstimate(
            flops=flops, transcendentals=0, bytes_accessed=bytes_accessed),
    )(x, w1, b1, w2, b2, w3, b3)

    # Strip batch and output-lane padding.
    return out[:B, :num_out]


def value_function(batch_size=1):
    # Mirrors CustomTorchModel.value_function(): torch.zeros(1)
    # TODO(synk): RLlib losses usually expect a [B]-shaped value output; the
    # original module returns a scalar zeros(1), which we reproduce verbatim.
    return jnp.zeros((1,), dtype=jnp.float32)


def init_params(key, obs_dim=10, hidden=256, num_outputs=5):
    """Deterministic init mimicking nn.Linear's default U(-1/sqrt(fan_in), .)."""
    ks = jax.random.split(key, 6)

    def linear(kw, kb, fan_in, fan_out):
        bound = 1.0 / math.sqrt(fan_in)
        w = jax.random.uniform(kw, (fan_in, fan_out), jnp.float32, -bound, bound)
        b = jax.random.uniform(kb, (1, fan_out), jnp.float32, -bound, bound)
        return w, b

    w1, b1 = linear(ks[0], ks[1], obs_dim, hidden)
    w2, b2 = linear(ks[2], ks[3], hidden, hidden)
    w3, b3 = linear(ks[4], ks[5], hidden, num_outputs)
    return {"w1": w1, "b1": b1, "w2": w2, "b2": b2, "w3": w3, "b3": b3}


def _reference_forward_f32(obs, p):
    h1 = jnp.maximum(obs @ p["w1"] + p["b1"], 0.0)
    h2 = jnp.maximum(h1 @ p["w2"] + p["b2"], 0.0)
    return h2 @ p["w3"] + p["b3"]


def _reference_forward_bf16(obs, p):
    """Reference mirroring the kernel's bf16-operand / f32-accumulate math."""
    bf = jnp.bfloat16
    x = obs.astype(bf)
    h1 = jnp.dot(x, p["w1"].astype(bf), preferred_element_type=jnp.float32) + p["b1"]
    h1 = jnp.maximum(h1, 0.0).astype(bf)
    h2 = jnp.dot(h1, p["w2"].astype(bf), preferred_element_type=jnp.float32) + p["b2"]
    h2 = jnp.maximum(h2, 0.0).astype(bf)
    return jnp.dot(h2, p["w3"].astype(bf), preferred_element_type=jnp.float32) + p["b3"]


if __name__ == "__main__":
    key = jax.random.PRNGKey(0)
    k_obs, k_par = jax.random.split(key)

    B, OBS_DIM, NUM_OUT = 8, 10, 5  # obs_space (10,), action_space Discrete(5)
    obs = jax.random.uniform(k_obs, (B, OBS_DIM), jnp.float32, 0.0, 1.0)
    params = init_params(k_par, obs_dim=OBS_DIM, hidden=256, num_outputs=NUM_OUT)

    # One-time parameter prep (hoisted out of the per-call path).
    prepared = prepare_params(params)

    state = []  # RLlib "state" passthrough (unchanged by forward)
    logits = custom_torch_model_forward(obs, prepared)
    logits = jax.block_until_ready(logits)
    vf = jax.block_until_ready(value_function())

    ref_bf16 = _reference_forward_bf16(obs, params)
    ref_f32 = _reference_forward_f32(obs, params)

    assert logits.shape == (B, NUM_OUT)
    # Tight check against a reference using identical bf16-operand math.
    assert jnp.allclose(logits, ref_bf16, atol=2e-3, rtol=2e-3)
    # Looser sanity check against the pure-f32 reference (bf16 quantization).
    assert jnp.allclose(logits, ref_f32, atol=5e-2, rtol=5e-2)
    assert vf.shape == (1,)

    # Exercise the multi-block / 2-TC path as well (moderate batch).
    B2 = 300
    obs2 = jax.random.uniform(jax.random.PRNGKey(1), (B2, OBS_DIM), jnp.float32)
    logits2 = jax.block_until_ready(custom_torch_model_forward(obs2, prepared))
    assert logits2.shape == (B2, NUM_OUT)
    assert jnp.allclose(logits2, _reference_forward_bf16(obs2, params),
                        atol=2e-3, rtol=2e-3)

    print("KERNEL_OK")
</pallas_src>

<mosaic_0001>
module attributes {stable_mosaic.version = 11 : i64} {
  func.func @_mlp_kernel(%arg0: i32, %arg1: memref<16x10xf32, #tpu.memory_space<vmem>>, %arg2: memref<10x256xbf16, #tpu.memory_space<vmem>>, %arg3: memref<1x256xf32, #tpu.memory_space<vmem>>, %arg4: memref<256x256xbf16, #tpu.memory_space<vmem>>, %arg5: memref<1x256xf32, #tpu.memory_space<vmem>>, %arg6: memref<256x128xbf16, #tpu.memory_space<vmem>>, %arg7: memref<1x128xf32, #tpu.memory_space<vmem>>, %arg8: memref<16x128xf32, #tpu.memory_space<vmem>>) attributes {dimension_semantics = [#tpu.dimension_semantics<parallel>], iteration_bounds = array<i64: 1>, scalar_prefetch = 0 : i64, scratch_operands = 0 : i64, tpu.core_type = #tpu.core_type<tc>, window_params = [{transform_indices = @transform_0, window_bounds = array<i64: 16, 10>}, {pipeline_mode = #tpu.pipeline_mode<synchronous>, transform_indices = @transform_1, window_bounds = array<i64: 10, 256>}, {pipeline_mode = #tpu.pipeline_mode<synchronous>, transform_indices = @transform_2, window_bounds = array<i64: 1, 256>}, {pipeline_mode = #tpu.pipeline_mode<synchronous>, transform_indices = @transform_3, window_bounds = array<i64: 256, 256>}, {pipeline_mode = #tpu.pipeline_mode<synchronous>, transform_indices = @transform_4, window_bounds = array<i64: 1, 256>}, {pipeline_mode = #tpu.pipeline_mode<synchronous>, transform_indices = @transform_5, window_bounds = array<i64: 256, 128>}, {pipeline_mode = #tpu.pipeline_mode<synchronous>, transform_indices = @transform_6, window_bounds = array<i64: 1, 128>}, {transform_indices = @transform_7, window_bounds = array<i64: 16, 128>}]} {
    %c0 = arith.constant 0 : index
    %c0_0 = arith.constant 0 : index
    %0 = vector.load %arg1[%c0, %c0_0] : memref<16x10xf32, #tpu.memory_space<vmem>>, vector<16x10xf32>
    %1 = arith.truncf %0 : vector<16x10xf32> to vector<16x10xbf16>
    %c0_1 = arith.constant 0 : index
    %c0_2 = arith.constant 0 : index
    %2 = vector.load %arg2[%c0_1, %c0_2] : memref<10x256xbf16, #tpu.memory_space<vmem>>, vector<10x256xbf16>
    %cst = arith.constant dense<0.000000e+00> : vector<16x256xf32>
    %3 = tpu.matmul %1, %2, %cst {dimension_numbers = #tpu.dot_dimension_numbers<[1], [0], [0], [1], [0, 0, 1, 1], [], []>} : vector<16x10xbf16>, vector<10x256xbf16>, vector<16x256xf32> -> vector<16x256xf32>
    %c0_3 = arith.constant 0 : index
    %c0_4 = arith.constant 0 : index
    %4 = vector.load %arg3[%c0_3, %c0_4] : memref<1x256xf32, #tpu.memory_space<vmem>>, vector<1x256xf32>
    %5 = vector.broadcast %4 : vector<1x256xf32> to vector<16x256xf32>
    %6 = arith.addf %3, %5 : vector<16x256xf32>
    %cst_5 = arith.constant 0.000000e+00 : f32
    %7 = vector.broadcast %cst_5 : f32 to vector<16x256xf32>
    %8 = arith.maximumf %6, %7 : vector<16x256xf32>
    %9 = arith.truncf %8 : vector<16x256xf32> to vector<16x256xbf16>
    %c0_6 = arith.constant 0 : index
    %c0_7 = arith.constant 0 : index
    %10 = vector.load %arg4[%c0_6, %c0_7] : memref<256x256xbf16, #tpu.memory_space<vmem>>, vector<256x256xbf16>
    %cst_8 = arith.constant dense<0.000000e+00> : vector<16x256xf32>
    %11 = tpu.matmul %9, %10, %cst_8 {dimension_numbers = #tpu.dot_dimension_numbers<[1], [0], [0], [1], [0, 0, 1, 1], [], []>} : vector<16x256xbf16>, vector<256x256xbf16>, vector<16x256xf32> -> vector<16x256xf32>
    %c0_9 = arith.constant 0 : index
    %c0_10 = arith.constant 0 : index
    %12 = vector.load %arg5[%c0_9, %c0_10] : memref<1x256xf32, #tpu.memory_space<vmem>>, vector<1x256xf32>
    %13 = vector.broadcast %12 : vector<1x256xf32> to vector<16x256xf32>
    %14 = arith.addf %11, %13 : vector<16x256xf32>
    %cst_11 = arith.constant 0.000000e+00 : f32
    %15 = vector.broadcast %cst_11 : f32 to vector<16x256xf32>
    %16 = arith.maximumf %14, %15 : vector<16x256xf32>
    %17 = arith.truncf %16 : vector<16x256xf32> to vector<16x256xbf16>
    %c0_12 = arith.constant 0 : index
    %c0_13 = arith.constant 0 : index
    %18 = vector.load %arg6[%c0_12, %c0_13] : memref<256x128xbf16, #tpu.memory_space<vmem>>, vector<256x128xbf16>
    %cst_14 = arith.constant dense<0.000000e+00> : vector<16x128xf32>
    %19 = tpu.matmul %17, %18, %cst_14 {dimension_numbers = #tpu.dot_dimension_numbers<[1], [0], [0], [1], [0, 0, 1, 1], [], []>} : vector<16x256xbf16>, vector<256x128xbf16>, vector<16x128xf32> -> vector<16x128xf32>
    %c0_15 = arith.constant 0 : index
    %c0_16 = arith.constant 0 : index
    %20 = vector.load %arg7[%c0_15, %c0_16] : memref<1x128xf32, #tpu.memory_space<vmem>>, vector<1x128xf32>
    %21 = vector.broadcast %20 : vector<1x128xf32> to vector<16x128xf32>
    %22 = arith.addf %19, %21 : vector<16x128xf32>
    %c0_17 = arith.constant 0 : index
    %c0_18 = arith.constant 0 : index
    %23 = vector.load %arg8[%c0_17, %c0_18] : memref<16x128xf32, #tpu.memory_space<vmem>>, vector<16x128xf32>
    tpu.vector_store %arg8[%c0_17, %c0_18], %22 {strides = array<i32>} : memref<16x128xf32, #tpu.memory_space<vmem>>, vector<16x128xf32>,
    return
  }
  func.func @transform_0(%arg0: i32) -> (i32, i32) {
    %c0_i32 = arith.constant 0 : i32
    %c0_i32_0 = arith.constant 0 : i32
    return %arg0, %c0_i32 : i32, i32
  }
  func.func @transform_1(%arg0: i32) -> (i32, i32) {
    %c0_i32 = arith.constant 0 : i32
    %c0_i32_0 = arith.constant 0 : i32
    %c0_i32_1 = arith.constant 0 : i32
    return %c0_i32, %c0_i32_0 : i32, i32
  }
  func.func @transform_2(%arg0: i32) -> (i32, i32) {
    %c0_i32 = arith.constant 0 : i32
    %c0_i32_0 = arith.constant 0 : i32
    %c0_i32_1 = arith.constant 0 : i32
    return %c0_i32, %c0_i32_0 : i32, i32
  }
  func.func @transform_3(%arg0: i32) -> (i32, i32) {
    %c0_i32 = arith.constant 0 : i32
    %c0_i32_0 = arith.constant 0 : i32
    %c0_i32_1 = arith.constant 0 : i32
    return %c0_i32, %c0_i32_0 : i32, i32
  }
  func.func @transform_4(%arg0: i32) -> (i32, i32) {
    %c0_i32 = arith.constant 0 : i32
    %c0_i32_0 = arith.constant 0 : i32
    %c0_i32_1 = arith.constant 0 : i32
    return %c0_i32, %c0_i32_0 : i32, i32
  }
  func.func @transform_5(%arg0: i32) -> (i32, i32) {
    %c0_i32 = arith.constant 0 : i32
    %c0_i32_0 = arith.constant 0 : i32
    %c0_i32_1 = arith.constant 0 : i32
    return %c0_i32, %c0_i32_0 : i32, i32
  }
  func.func @transform_6(%arg0: i32) -> (i32, i32) {
    %c0_i32 = arith.constant 0 : i32
    %c0_i32_0 = arith.constant 0 : i32
    %c0_i32_1 = arith.constant 0 : i32
    return %c0_i32, %c0_i32_0 : i32, i32
  }
  func.func @transform_7(%arg0: i32) -> (i32, i32) {
    %c0_i32 = arith.constant 0 : i32
    %c0_i32_0 = arith.constant 0 : i32
    return %arg0, %c0_i32 : i32, i32
  }
}

</mosaic_0001>

<llo_original>
// kernel: tpu_custom_call.1
$region0: #{tpu_custom_call.1}
  #allocation0 [shape = 'u32[]', space=smem, size = 0x4, offset = 0x4, fixed_abs, tag = 'smem constant byte address 0x4 - core index']
  #allocation1 [shape = 'u32[72,128]{1,0:T(1,128)}', space=vmem, size = 0x9000, scoped, tag = 'internal scratch']
  %s0 = inlined_call_operand.hbm [shape: f32[16,10], index: 0, kind: input, shape index: {}]
  %s1 = inlined_call_operand.hbm [shape: bf16[10,256], index: 1, kind: input, shape index: {}]
  %s2 = inlined_call_operand.hbm [shape: f32[1,256], index: 2, kind: input, shape index: {}]
  %s3 = inlined_call_operand.hbm [shape: bf16[256,256], index: 3, kind: input, shape index: {}]
  %s4 = inlined_call_operand.vmem [shape: f32[1,256], index: 4, kind: input, shape index: {}]
  %s5 = inlined_call_operand.hbm [shape: bf16[256,128], index: 5, kind: input, shape index: {}]
  %s6 = inlined_call_operand.vmem [shape: f32[1,128], index: 6, kind: input, shape index: {}]
  %s7 = inlined_call_operand.hbm [shape: f32[16,128], index: 7, kind: output, shape index: {}]
  %s8 = sld [smem:[#allocation0]]
  $region58: #{tpu_custom_call.1} parent=0
    _
  %s10 = ssub.s32 1, %s8
  %s11 = scalar_select 0, %s10, %s8
  $region1: #{tpu_custom_call.1} parent=0
    #allocation2 [shape = 'u8[8192]{0}', space=vmem, size = 0x2000, scoped, tag = 'input window, operand 0, single buffered']
    #allocation3 [shape = 's32[1]{0}', space=sflag, size = 0x4, scoped, tag = 'scoped memory for tpu_custom_call.1']
    #allocation4 [shape = 's32[1]{0}', space=sflag, size = 0x4, scoped, tag = 'scoped memory for tpu_custom_call.1']
    #allocation5 [shape = 'u8[8192]{0}', space=vmem, size = 0x2000, scoped, tag = 'input window, operand 1, single buffered']
    #allocation6 [shape = 's32[1]{0}', space=sflag, size = 0x4, scoped, tag = 'scoped memory for tpu_custom_call.1']
    #allocation7 [shape = 'u8[1024]{0}', space=vmem, size = 0x400, scoped, tag = 'input window, operand 2, single buffered']
    #allocation8 [shape = 'u8[131072]{0}', space=vmem, size = 0x20000, scoped, tag = 'input window, operand 3, single buffered']
    #allocation9 [shape = 's32[1]{0}', space=sflag, size = 0x4, scoped, tag = 'scoped memory for tpu_custom_call.1']
    #allocation10 [shape = 'u8[65536]{0}', space=vmem, size = 0x10000, scoped, tag = 'input window, operand 5, single buffered']
    #allocation11 [shape = 'u8[8192]{0}', space=vmem, size = 0x2000, scoped, tag = 'output window, operand 0, single buffered']
    %12 = vsyncpa [#allocation3], 0
    %13 = vsyncpa [#allocation6], 0
    %14 = vsyncpa [#allocation9], 0
    %15 = vsyncpa [#allocation4], 0
    // Predicated region
    $region2: #{tpu_custom_call.1} parent=1 // pred_check
      _
    $region3: #{tpu_custom_call.1} parent=1 // pred_check_branch
      %17 = sbr.rel (0) target = $region5
    $region4: #{tpu_custom_call.1} parent=1 // pred_region
      %19 = vsyncadd [#allocation3], 0
      %s20 = sshll.u32 %s0, 4
      %s21 = int_to_ptr.hbm [resolvable:$true] %s20
      %s22 = sshll.u32 [#allocation2], 4
      %s23 = int_to_ptr.vmem [resolvable:$true] %s22
      %28 = dma.hbm_to_vmem [thread:$0]  %s21, 256, %s23, [#allocation3], 128, 128, 8
    $region5: #{tpu_custom_call.1} parent=1 // pred_fallthru
      _
    // Predicated region
    $region6: #{tpu_custom_call.1} parent=1 // pred_check
      _
    $region7: #{tpu_custom_call.1} parent=1 // pred_check_branch
      %30 = sbr.rel (0) target = $region9
    $region8: #{tpu_custom_call.1} parent=1 // pred_region
      %32 = vsyncadd [#allocation6], 0
      %s33 = sshll.u32 %s1, 4
      %s34 = int_to_ptr.hbm [resolvable:$true] %s33
      %s35 = sshll.u32 [#allocation5], 4
      %s36 = int_to_ptr.vmem [resolvable:$true] %s35
      %41 = dma.hbm_to_vmem [thread:$0]  %s34, 256, %s36, [#allocation6], 128, 128, 8
    $region9: #{tpu_custom_call.1} parent=1 // pred_fallthru
      _
    // Predicated region
    $region10: #{tpu_custom_call.1} parent=1 // pred_check
      _
    $region11: #{tpu_custom_call.1} parent=1 // pred_check_branch
      %43 = sbr.rel (0) target = $region13
    $region12: #{tpu_custom_call.1} parent=1 // pred_region
      %45 = vsyncadd [#allocation6], 0
      %s47 = sshll.u32 %s2, 4
      %s48 = int_to_ptr.hbm [resolvable:$true] %s47
      %s49 = sshll.u32 [#allocation7], 4
      %s50 = int_to_ptr.vmem [resolvable:$true] %s49
      %52 = dma.hbm_to_vmem [thread:$0]  %s48, 32, %s50, [#allocation6]
    $region13: #{tpu_custom_call.1} parent=1 // pred_fallthru
      _
    // Predicated region
    $region14: #{tpu_custom_call.1} parent=1 // pred_check
      _
    $region15: #{tpu_custom_call.1} parent=1 // pred_check_branch
      %54 = sbr.rel (0) target = $region17
    $region16: #{tpu_custom_call.1} parent=1 // pred_region
      %56 = vsyncadd [#allocation9], 0
      %s57 = sshll.u32 %s3, 4
      %s58 = int_to_ptr.hbm [resolvable:$true] %s57
      %s59 = sshll.u32 [#allocation8], 4
      %s60 = int_to_ptr.vmem [resolvable:$true] %s59
      %65 = dma.hbm_to_vmem [thread:$0]  %s58, 4096, %s60, [#allocation9], 128, 128, 8
    $region17: #{tpu_custom_call.1} parent=1 // pred_fallthru
      _
    // Predicated region
    $region18: #{tpu_custom_call.1} parent=1 // pred_check
      _
    $region19: #{tpu_custom_call.1} parent=1 // pred_check_branch
      %67 = sbr.rel (0) target = $region21
    $region20: #{tpu_custom_call.1} parent=1 // pred_region
      _
    $region21: #{tpu_custom_call.1} parent=1 // pred_fallthru
      _
    // Predicated region
    $region22: #{tpu_custom_call.1} parent=1 // pred_check
      _
    $region23: #{tpu_custom_call.1} parent=1 // pred_check_branch
      %69 = sbr.rel (0) target = $region25
    $region24: #{tpu_custom_call.1} parent=1 // pred_region
      %71 = vsyncadd [#allocation9], 0
      %s72 = sshll.u32 %s5, 4
      %s73 = int_to_ptr.hbm [resolvable:$true] %s72
      %s74 = sshll.u32 [#allocation10], 4
      %s75 = int_to_ptr.vmem [resolvable:$true] %s74
      %80 = dma.hbm_to_vmem [thread:$0]  %s73, 2048, %s75, [#allocation9], 64, 64, 4
    $region25: #{tpu_custom_call.1} parent=1 // pred_fallthru
      _
    // Predicated region
    $region26: #{tpu_custom_call.1} parent=1 // pred_check
      _
    $region27: #{tpu_custom_call.1} parent=1 // pred_check_branch
      %82 = sbr.rel (0) target = $region29
    $region28: #{tpu_custom_call.1} parent=1 // pred_region
      _
    $region29: #{tpu_custom_call.1} parent=1 // pred_fallthru
      _
    // Predicated region
    $region30: #{tpu_custom_call.1} parent=1 // pred_check
      _
    $region31: #{tpu_custom_call.1} parent=1 // pred_check_branch
      %84 = sbr.rel (0) target = $region33
    $region32: #{tpu_custom_call.1} parent=1 // pred_region
      %86 = dma.done [#allocation3], 256
    $region33: #{tpu_custom_call.1} parent=1 // pred_fallthru
      _
    // Predicated region
    $region34: #{tpu_custom_call.1} parent=1 // pred_check
      _
    $region35: #{tpu_custom_call.1} parent=1 // pred_check_branch
      %88 = sbr.rel (0) target = $region37
    $region36: #{tpu_custom_call.1} parent=1 // pred_region
      %90 = dma.done [#allocation6], 256
    $region37: #{tpu_custom_call.1} parent=1 // pred_fallthru
      _
    // Predicated region
    $region38: #{tpu_custom_call.1} parent=1 // pred_check
      _
    $region39: #{tpu_custom_call.1} parent=1 // pred_check_branch
      %92 = sbr.rel (0) target = $region41
    $region40: #{tpu_custom_call.1} parent=1 // pred_region
      %94 = dma.done [#allocation6], 32
    $region41: #{tpu_custom_call.1} parent=1 // pred_fallthru
      _
    // Predicated region
    $region42: #{tpu_custom_call.1} parent=1 // pred_check
      _
    $region43: #{tpu_custom_call.1} parent=1 // pred_check_branch
      %96 = sbr.rel (0) target = $region45
    $region44: #{tpu_custom_call.1} parent=1 // pred_region
      %98 = dma.done [#allocation9], 4096
    $region45: #{tpu_custom_call.1} parent=1 // pred_fallthru
      _
    // Predicated region
    $region46: #{tpu_custom_call.1} parent=1 // pred_check
      _
    $region47: #{tpu_custom_call.1} parent=1 // pred_check_branch
      %100 = sbr.rel (0) target = $region49
    $region48: #{tpu_custom_call.1} parent=1 // pred_region
      %102 = dma.done [#allocation9], 2048
    $region49: #{tpu_custom_call.1} parent=1 // pred_fallthru
      _
    %v104 = vld [vmem:[#allocation2] sm:$0xff]
    %v105 = vld [vmem:[#allocation2 + $0x8] sm:$0xff]
    %v106 = vpack.c.bf16 %v105, %v104
    %v107 = vld [vmem:[#allocation5] sm:$0xff]
    %v108 = vld [vmem:[#allocation5 + $0x8] sm:$0x11]
    %v109 = vld [vmem:[#allocation7] sm:$0x3]
    %v111 = vperm.slane %v109, 0
    %v112 = vperm.slane %v109, 1
    %v117 = vunpack.c.l.b16 %v107
    %v118 = vunpack.c.h.b16 %v107
    %v119 = vunpack.c.l.b16 %v108
    %v120 = vunpack.c.h.b16 %v108
    %v121 = vpack.c.b16 %v119, %v117
    %v122 = vpack.c.b16 %v120, %v118
    %vm123 = vcmask 80896
    %v125 = vsel %vm123, %v106, 0
    %vm127 = vcmask 1044480
    %v129 = vsel %vm127, %v121, 0
    %v132 = vsel %vm127, %v122, 0
    %134 = vmatpush.bf16.msra.mxu0 0
    %135 = vmatpush.bf16.msra.mxu0 0
    %136 = vmatpush.bf16.msra.mxu0 0
    %137 = vmatpush.bf16.msra.mxu0 0
    %138 = vmatpush.bf16.msra.mxu0 0
    %139 = vmatpush.bf16.msra.mxu0 0
    %140 = vmatpush.bf16.msra.mxu0 0
    %141 = vmatpush.bf16.msra.mxu0 %v129
    %142 = vmatmul.bf16.gmra.mxu0 %v125
    %v143 = vpop.f32.mrf.mxu0
    %v144 = vadd.f32 %v111, %v143
    %v145 = vpop.f32.mrf.mxu0
    %v146 = vadd.f32 %v111, %v145
    %147 = vdwg.mxu0
    %148 = vmatpush.bf16.msra.mxu0 0
    %149 = vmatpush.bf16.msra.mxu0 0
    %150 = vmatpush.bf16.msra.mxu0 0
    %151 = vmatpush.bf16.msra.mxu0 0
    %152 = vmatpush.bf16.msra.mxu0 0
    %153 = vmatpush.bf16.msra.mxu0 0
    %154 = vmatpush.bf16.msra.mxu0 0
    %155 = vmatpush.bf16.msra.mxu0 %v132
    %156 = vmatmul.bf16.gmra.mxu0 %v125
    %v157 = vpop.f32.mrf.mxu0
    %v158 = vadd.f32 %v112, %v157
    %v159 = vpop.f32.mrf.mxu0
    %v160 = vadd.f32 %v112, %v159
    %161 = vdwg.mxu0
    %v162 = vmax.f32 %v144, 0.0
    %v163 = vmax.f32 %v158, 0.0
    %v164 = vmax.f32 %v146, 0.0
    %v165 = vmax.f32 %v160, 0.0
    %v166 = vpack.c.bf16 %v164, %v162
    %v167 = vpack.c.bf16 %v165, %v163
    %v168 = vld [vmem:[#allocation8] sm:$0xff]
    %v169 = vld [vmem:[#allocation8 + $0x8] sm:$0xff]
    %v170 = vld [vmem:[#allocation8 + $0x10] sm:$0xff]
    %v171 = vld [vmem:[#allocation8 + $0x18] sm:$0xff]
    %v172 = vld [vmem:[#allocation8 + $0x20] sm:$0xff]
    %v173 = vld [vmem:[#allocation8 + $0x28] sm:$0xff]
    %v174 = vld [vmem:[#allocation8 + $0x30] sm:$0xff]
    %v175 = vld [vmem:[#allocation8 + $0x38] sm:$0xff]
    %v176 = vld [vmem:[#allocation8 + $0x40] sm:$0xff]
    %v177 = vld [vmem:[#allocation8 + $0x48] sm:$0xff]
    %v178 = vld [vmem:[#allocation8 + $0x50] sm:$0xff]
    %v179 = vld [vmem:[#allocation8 + $0x58] sm:$0xff]
    %v180 = vld [vmem:[#allocation8 + $0x60] sm:$0xff]
    %v181 = vld [vmem:[#allocation8 + $0x68] sm:$0xff]
    %v182 = vld [vmem:[#allocation8 + $0x70] sm:$0xff]
    %v183 = vld [vmem:[#allocation8 + $0x78] sm:$0xff]
    %v184 = vld [vmem:[#allocation8 + $0x80] sm:$0xff]
    %v185 = vld [vmem:[#allocation8 + $0x88] sm:$0xff]
    %v186 = vld [vmem:[#allocation8 + $0x90] sm:$0xff]
    %v187 = vld [vmem:[#allocation8 + $0x98] sm:$0xff]
    %v188 = vld [vmem:[#allocation8 + $0xa0] sm:$0xff]
    %v189 = vld [vmem:[#allocation8 + $0xa8] sm:$0xff]
    %v190 = vld [vmem:[#allocation8 + $0xb0] sm:$0xff]
    %v191 = vld [vmem:[#allocation8 + $0xb8] sm:$0xff]
    %v192 = vld [vmem:[#allocation8 + $0xc0] sm:$0xff]
    %v193 = vld [vmem:[#allocation8 + $0xc8] sm:$0xff]
    %v194 = vld [vmem:[#allocation8 + $0xd0] sm:$0xff]
    %v195 = vld [vmem:[#allocation8 + $0xd8] sm:$0xff]
    %v196 = vld [vmem:[#allocation8 + $0xe0] sm:$0xff]
    %v197 = vld [vmem:[#allocation8 + $0xe8] sm:$0xff]
    %v198 = vld [vmem:[#allocation8 + $0xf0] sm:$0xff]
    %v199 = vld [vmem:[#allocation8 + $0xf8] sm:$0xff]
    %v200 = vld [vmem:[%s4] sm:$0x3]
    %v202 = vperm.slane %v200, 0
    %v203 = vperm.slane %v200, 1
    %v238 = vunpack.c.l.b16 %v168
    %v239 = vunpack.c.h.b16 %v168
    %v240 = vunpack.c.l.b16 %v169
    %v241 = vunpack.c.h.b16 %v169
    %v242 = vunpack.c.l.b16 %v170
    %v243 = vunpack.c.h.b16 %v170
    %v244 = vunpack.c.l.b16 %v171
    %v245 = vunpack.c.h.b16 %v171
    %v246 = vunpack.c.l.b16 %v172
    %v247 = vunpack.c.h.b16 %v172
    %v248 = vunpack.c.l.b16 %v173
    %v249 = vunpack.c.h.b16 %v173
    %v250 = vunpack.c.l.b16 %v174
    %v251 = vunpack.c.h.b16 %v174
    %v252 = vunpack.c.l.b16 %v175
    %v253 = vunpack.c.h.b16 %v175
    %v254 = vunpack.c.l.b16 %v176
    %v255 = vunpack.c.h.b16 %v176
    %v256 = vunpack.c.l.b16 %v177
    %v257 = vunpack.c.h.b16 %v177
    %v258 = vunpack.c.l.b16 %v178
    %v259 = vunpack.c.h.b16 %v178
    %v260 = vunpack.c.l.b16 %v179
    %v261 = vunpack.c.h.b16 %v179
    %v262 = vunpack.c.l.b16 %v180
    %v263 = vunpack.c.h.b16 %v180
    %v264 = vunpack.c.l.b16 %v181
    %v265 = vunpack.c.h.b16 %v181
    %v266 = vunpack.c.l.b16 %v182
    %v267 = vunpack.c.h.b16 %v182
    %v268 = vunpack.c.l.b16 %v183
    %v269 = vunpack.c.h.b16 %v183
    %v270 = vunpack.c.l.b16 %v184
    %v271 = vunpack.c.h.b16 %v184
    %v272 = vunpack.c.l.b16 %v185
    %v273 = vunpack.c.h.b16 %v185
    %v274 = vunpack.c.l.b16 %v186
    %v275 = vunpack.c.h.b16 %v186
    %v276 = vunpack.c.l.b16 %v187
    %v277 = vunpack.c.h.b16 %v187
    %v278 = vunpack.c.l.b16 %v188
    %v279 = vunpack.c.h.b16 %v188
    %v280 = vunpack.c.l.b16 %v189
    %v281 = vunpack.c.h.b16 %v189
    %v282 = vunpack.c.l.b16 %v190
    %v283 = vunpack.c.h.b16 %v190
    %v284 = vunpack.c.l.b16 %v191
    %v285 = vunpack.c.h.b16 %v191
    %v286 = vunpack.c.l.b16 %v192
    %v287 = vunpack.c.h.b16 %v192
    %v288 = vunpack.c.l.b16 %v193
    %v289 = vunpack.c.h.b16 %v193
    %v290 = vunpack.c.l.b16 %v194
    %v291 = vunpack.c.h.b16 %v194
    %v292 = vunpack.c.l.b16 %v195
    %v293 = vunpack.c.h.b16 %v195
    %v294 = vunpack.c.l.b16 %v196
    %v295 = vunpack.c.h.b16 %v196
    %v296 = vunpack.c.l.b16 %v197
    %v297 = vunpack.c.h.b16 %v197
    %v298 = vunpack.c.l.b16 %v198
    %v299 = vunpack.c.h.b16 %v198
    %v300 = vunpack.c.l.b16 %v199
    %v301 = vunpack.c.h.b16 %v199
    %v302 = vpack.c.b16 %v240, %v238
    %v303 = vpack.c.b16 %v241, %v239
    %v304 = vpack.c.b16 %v244, %v242
    %v305 = vpack.c.b16 %v245, %v243
    %v306 = vpack.c.b16 %v248, %v246
    %v307 = vpack.c.b16 %v249, %v247
    %v308 = vpack.c.b16 %v252, %v250
    %v309 = vpack.c.b16 %v253, %v251
    %v310 = vpack.c.b16 %v256, %v254
    %v311 = vpack.c.b16 %v257, %v255
    %v312 = vpack.c.b16 %v260, %v258
    %v313 = vpack.c.b16 %v261, %v259
    %v314 = vpack.c.b16 %v264, %v262
    %v315 = vpack.c.b16 %v265, %v263
    %v316 = vpack.c.b16 %v268, %v266
    %v317 = vpack.c.b16 %v269, %v267
    %v318 = vpack.c.b16 %v272, %v270
    %v319 = vpack.c.b16 %v273, %v271
    %v320 = vpack.c.b16 %v276, %v274
    %v321 = vpack.c.b16 %v277, %v275
    %v322 = vpack.c.b16 %v280, %v278
    %v323 = vpack.c.b16 %v281, %v279
    %v324 = vpack.c.b16 %v284, %v282
    %v325 = vpack.c.b16 %v285, %v283
    %v326 = vpack.c.b16 %v288, %v286
    %v327 = vpack.c.b16 %v289, %v287
    %v328 = vpack.c.b16 %v292, %v290
    %v329 = vpack.c.b16 %v293, %v291
    %v330 = vpack.c.b16 %v296, %v294
    %v331 = vpack.c.b16 %v297, %v295
    %v332 = vpack.c.b16 %v300, %v298
    %v333 = vpack.c.b16 %v301, %v299
    %366 = vmatpush.bf16.msra.mxu0 %v316
    %367 = vmatpush.bf16.msra.mxu0 %v314
    %368 = vmatpush.bf16.msra.mxu0 %v312
    %369 = vmatpush.bf16.msra.mxu0 %v310
    %370 = vmatpush.bf16.msra.mxu0 %v308
    %371 = vmatpush.bf16.msra.mxu0 %v306
    %372 = vmatpush.bf16.msra.mxu0 %v304
    %373 = vmatpush.bf16.msra.mxu0 %v302
    %374 = vmatmul.bf16.gmra.mxu0 %v166
    %v375 = vpop.f32.mrf.mxu0
    %v376 = vadd.f32 %v202, %v375
    %v377 = vpop.f32.mrf.mxu0
    %v378 = vadd.f32 %v202, %v377
    %379 = vdwg.mxu0
    %380 = vmatpush.bf16.msra.mxu0 %v332
    %381 = vmatpush.bf16.msra.mxu0 %v330
    %382 = vmatpush.bf16.msra.mxu0 %v328
    %383 = vmatpush.bf16.msra.mxu0 %v326
    %384 = vmatpush.bf16.msra.mxu0 %v324
    %385 = vmatpush.bf16.msra.mxu0 %v322
    %386 = vmatpush.bf16.msra.mxu0 %v320
    %387 = vmatpush.bf16.msra.mxu0 %v318
    %388 = vmatmul.bf16.gmra.mxu0 %v167
    %v389 = vpop.f32.mrf.mxu0
    %v390 = vadd.f32 %v376, %v389
    %v391 = vpop.f32.mrf.mxu0
    %v392 = vadd.f32 %v378, %v391
    %393 = vdwg.mxu0
    %394 = vmatpush.bf16.msra.mxu0 %v317
    %395 = vmatpush.bf16.msra.mxu0 %v315
    %396 = vmatpush.bf16.msra.mxu0 %v313
    %397 = vmatpush.bf16.msra.mxu0 %v311
    %398 = vmatpush.bf16.msra.mxu0 %v309
    %399 = vmatpush.bf16.msra.mxu0 %v307
    %400 = vmatpush.bf16.msra.mxu0 %v305
    %401 = vmatpush.bf16.msra.mxu0 %v303
    %402 = vmatmul.bf16.gmra.mxu0 %v166
    %v403 = vpop.f32.mrf.mxu0
    %v404 = vadd.f32 %v203, %v403
    %v405 = vpop.f32.mrf.mxu0
    %v406 = vadd.f32 %v203, %v405
    %407 = vdwg.mxu0
    %408 = vmatpush.bf16.msra.mxu0 %v333
    %409 = vmatpush.bf16.msra.mxu0 %v331
    %410 = vmatpush.bf16.msra.mxu0 %v329
    %411 = vmatpush.bf16.msra.mxu0 %v327
    %412 = vmatpush.bf16.msra.mxu0 %v325
    %413 = vmatpush.bf16.msra.mxu0 %v323
    %414 = vmatpush.bf16.msra.mxu0 %v321
    %415 = vmatpush.bf16.msra.mxu0 %v319
    %416 = vmatmul.bf16.gmra.mxu0 %v167
    %v417 = vpop.f32.mrf.mxu0
    %v418 = vadd.f32 %v404, %v417
    %v419 = vpop.f32.mrf.mxu0
    %v420 = vadd.f32 %v406, %v419
    %421 = vdwg.mxu0
    %v422 = vmax.f32 %v390, 0.0
    %v423 = vmax.f32 %v418, 0.0
    %v424 = vmax.f32 %v392, 0.0
    %v425 = vmax.f32 %v420, 0.0
    %v426 = vpack.c.bf16 %v424, %v422
    %v427 = vpack.c.bf16 %v425, %v423
    %v428 = vld [vmem:[#allocation10] sm:$0xf]
    %v429 = vld [vmem:[#allocation10 + $0x4] sm:$0xf]
    %v430 = vld [vmem:[#allocation10 + $0x8] sm:$0xf]
    %v431 = vld [vmem:[#allocation10 + $0xc] sm:$0xf]
    %v432 = vld [vmem:[#allocation10 + $0x10] sm:$0xf]
    %v433 = vld [vmem:[#allocation10 + $0x14] sm:$0xf]
    %v434 = vld [vmem:[#allocation10 + $0x18] sm:$0xf]
    %v435 = vld [vmem:[#allocation10 + $0x1c] sm:$0xf]
    %v436 = vld [vmem:[#allocation10 + $0x20] sm:$0xf]
    %v437 = vld [vmem:[#allocation10 + $0x24] sm:$0xf]
    %v438 = vld [vmem:[#allocation10 + $0x28] sm:$0xf]
    %v439 = vld [vmem:[#allocation10 + $0x2c] sm:$0xf]
    %v440 = vld [vmem:[#allocation10 + $0x30] sm:$0xf]
    %v441 = vld [vmem:[#allocation10 + $0x34] sm:$0xf]
    %v442 = vld [vmem:[#allocation10 + $0x38] sm:$0xf]
    %v443 = vld [vmem:[#allocation10 + $0x3c] sm:$0xf]
    %v444 = vld [vmem:[#allocation10 + $0x40] sm:$0xf]
    %v445 = vld [vmem:[#allocation10 + $0x44] sm:$0xf]
    %v446 = vld [vmem:[#allocation10 + $0x48] sm:$0xf]
    %v447 = vld [vmem:[#allocation10 + $0x4c] sm:$0xf]
    %v448 = vld [vmem:[#allocation10 + $0x50] sm:$0xf]
    %v449 = vld [vmem:[#allocation10 + $0x54] sm:$0xf]
    %v450 = vld [vmem:[#allocation10 + $0x58] sm:$0xf]
    %v451 = vld [vmem:[#allocation10 + $0x5c] sm:$0xf]
    %v452 = vld [vmem:[#allocation10 + $0x60] sm:$0xf]
    %v453 = vld [vmem:[#allocation10 + $0x64] sm:$0xf]
    %v454 = vld [vmem:[#allocation10 + $0x68] sm:$0xf]
    %v455 = vld [vmem:[#allocation10 + $0x6c] sm:$0xf]
    %v456 = vld [vmem:[#allocation10 + $0x70] sm:$0xf]
    %v457 = vld [vmem:[#allocation10 + $0x74] sm:$0xf]
    %v458 = vld [vmem:[#allocation10 + $0x78] sm:$0xf]
    %v459 = vld [vmem:[#allocation10 + $0x7c] sm:$0xf]
    %v460 = vld [vmem:[%s6] sm:$0x1]
    %v462 = vperm.slane %v460, 0
    %v496 = vunpack.c.l.b16 %v428
    %v497 = vunpack.c.l.b16 %v429
    %v498 = vunpack.c.l.b16 %v430
    %v499 = vunpack.c.l.b16 %v431
    %v500 = vunpack.c.l.b16 %v432
    %v501 = vunpack.c.l.b16 %v433
    %v502 = vunpack.c.l.b16 %v434
    %v503 = vunpack.c.l.b16 %v435
    %v504 = vunpack.c.l.b16 %v436
    %v505 = vunpack.c.l.b16 %v437
    %v506 = vunpack.c.l.b16 %v438
    %v507 = vunpack.c.l.b16 %v439
    %v508 = vunpack.c.l.b16 %v440
    %v509 = vunpack.c.l.b16 %v441
    %v510 = vunpack.c.l.b16 %v442
    %v511 = vunpack.c.l.b16 %v443
    %v512 = vunpack.c.l.b16 %v444
    %v513 = vunpack.c.l.b16 %v445
    %v514 = vunpack.c.l.b16 %v446
    %v515 = vunpack.c.l.b16 %v447
    %v516 = vunpack.c.l.b16 %v448
    %v517 = vunpack.c.l.b16 %v449
    %v518 = vunpack.c.l.b16 %v450
    %v519 = vunpack.c.l.b16 %v451
    %v520 = vunpack.c.l.b16 %v452
    %v521 = vunpack.c.l.b16 %v453
    %v522 = vunpack.c.l.b16 %v454
    %v523 = vunpack.c.l.b16 %v455
    %v524 = vunpack.c.l.b16 %v456
    %v525 = vunpack.c.l.b16 %v457
    %v526 = vunpack.c.l.b16 %v458
    %v527 = vunpack.c.l.b16 %v459
    %v528 = vpack.c.b16 %v497, %v496
    %v529 = vpack.c.b16 %v499, %v498
    %v530 = vpack.c.b16 %v501, %v500
    %v531 = vpack.c.b16 %v503, %v502
    %v532 = vpack.c.b16 %v505, %v504
    %v533 = vpack.c.b16 %v507, %v506
    %v534 = vpack.c.b16 %v509, %v508
    %v535 = vpack.c.b16 %v511, %v510
    %v536 = vpack.c.b16 %v513, %v512
    %v537 = vpack.c.b16 %v515, %v514
    %v538 = vpack.c.b16 %v517, %v516
    %v539 = vpack.c.b16 %v519, %v518
    %v540 = vpack.c.b16 %v521, %v520
    %v541 = vpack.c.b16 %v523, %v522
    %v542 = vpack.c.b16 %v525, %v524
    %v543 = vpack.c.b16 %v527, %v526
    %560 = vmatpush.bf16.msra.mxu0 %v535
    %561 = vmatpush.bf16.msra.mxu0 %v534
    %562 = vmatpush.bf16.msra.mxu0 %v533
    %563 = vmatpush.bf16.msra.mxu0 %v532
    %564 = vmatpush.bf16.msra.mxu0 %v531
    %565 = vmatpush.bf16.msra.mxu0 %v530
    %566 = vmatpush.bf16.msra.mxu0 %v529
    %567 = vmatpush.bf16.msra.mxu0 %v528
    %568 = vmatmul.bf16.gmra.mxu0 %v426
    %v569 = vpop.f32.mrf.mxu0
    %v570 = vadd.f32 %v462, %v569
    %v571 = vpop.f32.mrf.mxu0
    %v572 = vadd.f32 %v462, %v571
    %573 = vdwg.mxu0
    %574 = vmatpush.bf16.msra.mxu0 %v543
    %575 = vmatpush.bf16.msra.mxu0 %v542
    %576 = vmatpush.bf16.msra.mxu0 %v541
    %577 = vmatpush.bf16.msra.mxu0 %v540
    %578 = vmatpush.bf16.msra.mxu0 %v539
    %579 = vmatpush.bf16.msra.mxu0 %v538
    %580 = vmatpush.bf16.msra.mxu0 %v537
    %581 = vmatpush.bf16.msra.mxu0 %v536
    %582 = vmatmul.bf16.gmra.mxu0 %v427
    %v583 = vpop.f32.mrf.mxu0
    %v584 = vadd.f32 %v570, %v583
    %v585 = vpop.f32.mrf.mxu0
    %v586 = vadd.f32 %v572, %v585
    %587 = vdwg.mxu0
    %588 = vst [vmem:[#allocation11] sm:$0xff] %v584
    %589 = vst [vmem:[#allocation11 + $0x8] sm:$0xff] %v586
    // Predicated region
    $region50: #{tpu_custom_call.1} parent=1 // pred_check
      _
    $region51: #{tpu_custom_call.1} parent=1 // pred_check_branch
      %591 = sbr.rel (0) target = $region53
    $region52: #{tpu_custom_call.1} parent=1 // pred_region
      %593 = vsyncadd [#allocation4], 0
      %s594 = sshll.u32 [#allocation11], 4
      %s595 = int_to_ptr.vmem [resolvable:$true] %s594
      %s596 = sshll.u32 %s7, 4
      %s597 = int_to_ptr.hbm [resolvable:$true] %s596
      %602 = dma.vmem_to_hbm [thread:$0]  %s595, 256, %s597, [#allocation4], 128, 128, 8
    $region53: #{tpu_custom_call.1} parent=1 // pred_fallthru
      _
    // Predicated region
    $region54: #{tpu_custom_call.1} parent=1 // pred_check
      _
    $region55: #{tpu_custom_call.1} parent=1 // pred_check_branch
      %604 = sbr.rel (0) target = $region57
    $region56: #{tpu_custom_call.1} parent=1 // pred_region
      %606 = dma.done [#allocation4], 256
    $region57: #{tpu_custom_call.1} parent=1 // pred_fallthru
      _
    %607 = vsyncpa [#allocation3], 1
    %608 = vsyncpa [#allocation6], 1
    %609 = vsyncpa [#allocation9], 1
    %610 = vsyncpa [#allocation4], 1

</llo_original>
